<compile_context>
chip_gen: v7x
topology: tpu7x:2x2x1
jax: 0.10.0
libtpu: 0.0.40
codegen_flags: <defaults>
</compile_context>

<pallas_src>
import functools

import jax
import jax.numpy as jnp
from jax import lax
from jax.experimental import pallas as pl
from jax.experimental.pallas import tpu as pltpu

BN_EPS = 1e-5
H1, H2 = 32, 16          # hidden widths fixed by the module definition


def _round_up(a, b):
    return (a + b - 1) // b * b


def feature_mlp_kernel(x_ref, w1_ref, w2_ref, w3_ref,
                       g1_ref, be1_ref, g2_ref, be2_ref, b3_ref,
                       o_ref, stats_ref, *, n_rows, n_pad, row_block):
    """stats_ref rows: 0 L1 sum | 1 L1 sumsq | 2 L2 sum | 3 L2 sumsq
                       4 sc1    | 5 sh1      | 6 sc2    | 7 sh2"""
    p = pl.program_id(0)      # phase: 0 = layer-1 stats, 1 = layer-2 stats, 2 = emit
    t = pl.program_id(1)      # row tile

    x = x_ref[...]
    w1 = w1_ref[...]
    w2 = w2_ref[...]

    # Zero-padded tail rows (only present when N % row_block != 0) must not
    # contribute to the batch statistics.  Static no-op when there is no padding.
    padded = n_pad != n_rows
    if padded:
        row_id = t * row_block + lax.broadcasted_iota(jnp.int32, (row_block, 1), 0)
        valid = row_id < n_rows

    inv_n = 1.0 / float(n_rows)

    def folded_bn(sum_row, sumsq_row, gamma, beta):
        # One scale/shift per feature: h_norm = h * scale + shift.
        mu = sum_row * inv_n
        # Clamp: single-pass E[h^2] - mu^2 can go slightly negative by cancellation.
        var = jnp.maximum(sumsq_row * inv_n - mu * mu, 0.0)
        scale = gamma * lax.rsqrt(var + BN_EPS)
        shift = beta - mu * scale
        return jnp.concatenate([scale, shift], axis=0)          # (2, H)

    def linear1(xv):
        # b1 dropped: the training-mode BN mean subtraction cancels it exactly.
        return jnp.dot(xv, w1, preferred_element_type=jnp.float32)

    def linear2(h1):
        # b2 dropped for the same reason.
        return jnp.dot(h1, w2, preferred_element_type=jnp.float32)

    @pl.when(jnp.logical_and(p == 0, t == 0))
    def _init():
        stats_ref[...] = jnp.zeros_like(stats_ref)
        # Output block 0 stays parked during phases 0/1; make sure its buffer never
        # holds garbage even if a future Pallas version flushes it before phase 2.
        o_ref[...] = jnp.zeros_like(o_ref)

    # Hoisted BN folds: one rsqrt / scale-shift computation per phase, not per tile.
    @pl.when(jnp.logical_and(p == 1, t == 0))
    def _fold_bn1():
        stats_ref[4:6, 0:H1] = folded_bn(stats_ref[0:1, 0:H1], stats_ref[1:2, 0:H1],
                                         g1_ref[...], be1_ref[...])

    @pl.when(jnp.logical_and(p == 2, t == 0))
    def _fold_bn2():
        stats_ref[6:8, 0:H2] = folded_bn(stats_ref[2:3, 0:H2], stats_ref[3:4, 0:H2],
                                         g2_ref[...], be2_ref[...])

    @pl.when(p == 0)                 # accumulate layer-1 batch sum / sum-of-squares
    def _phase0():
        h1 = linear1(x)
        if padded:
            h1 = jnp.where(valid, h1, 0.0)
        upd = jnp.concatenate([jnp.sum(h1, axis=0, keepdims=True),
                               jnp.sum(h1 * h1, axis=0, keepdims=True)], axis=0)
        stats_ref[0:2, 0:H1] += upd

    @pl.when(p == 1)                 # accumulate layer-2 batch sum / sum-of-squares
    def _phase1():
        sc1, sh1 = stats_ref[4:5, 0:H1], stats_ref[5:6, 0:H1]
        h1 = jnp.maximum(linear1(x) * sc1 + sh1, 0.0)
        h2 = linear2(h1)
        if padded:
            h2 = jnp.where(valid, h2, 0.0)
        upd = jnp.concatenate([jnp.sum(h2, axis=0, keepdims=True),
                               jnp.sum(h2 * h2, axis=0, keepdims=True)], axis=0)
        stats_ref[2:4, 0:H2] += upd

    @pl.when(p == 2)                 # normalize with full-batch stats and emit output
    def _phase2():
        sc1, sh1 = stats_ref[4:5, 0:H1], stats_ref[5:6, 0:H1]
        sc2, sh2 = stats_ref[6:7, 0:H2], stats_ref[7:8, 0:H2]
        h1 = jnp.maximum(linear1(x) * sc1 + sh1, 0.0)
        h2 = jnp.maximum(linear2(h1) * sc2 + sh2, 0.0)
        o = jnp.dot(h2, w3_ref[...], preferred_element_type=jnp.float32) + b3_ref[...]
        # sigmoid(x) = 0.5*tanh(x/2)+0.5: transcendental on the EUP slot, no VPU divide.
        o_ref[...] = 0.5 * jnp.tanh(0.5 * o) + 0.5


def _vmem_budget_bytes():
    """Generation-aware usable VMEM (~75% of physical: ~48 MiB v7x, ~96 MiB v5e/v6e)."""
    try:
        cap = int(pltpu.get_tpu_info().vmem_capacity_bytes)
    except Exception:
        cap = 64 * 1024 * 1024            # conservative fallback (v7x-sized)
    return (cap * 3) // 4


def feature_mlp(x, params, *, row_block=8192):
    """x: [N, in_dim] float32; params dict (see init_params). Returns [N, out_dim]."""
    N, in_dim = x.shape
    w1, w2, w3 = params["w1"], params["w2"], params["w3"]
    out_dim = w3.shape[1]
    assert w1.shape == (in_dim, H1) and w2.shape == (H1, H2) and w3.shape[0] == H2

    budget = _vmem_budget_bytes()

    # Lane-padded VMEM footprint of the double-buffered resident params + scratch.
    param_bytes = 2 * 4 * (_round_up(in_dim, 8) * 128            # w1
                           + H1 * 128                            # w2
                           + H2 * _round_up(out_dim, 128)        # w3
                           + 5 * 8 * 128)                        # g1, be1, g2, be2, b3
    param_bytes += 8 * 128 * 4                                   # stats scratch

    # Lane-padded, double-buffered VMEM bytes per streamed row (x tile + out tile).
    per_row = 2 * 4 * (_round_up(in_dim, 128) + _round_up(out_dim, 128))
    avail = budget - param_bytes - (1 << 20)                     # ~1 MiB slack

    n_pad8 = _round_up(max(N, 1), 8)
    if per_row * n_pad8 <= avail:
        # Resident-x fast path: one row tile -> constant x block index across all
        # 3 phases -> x is DMA'd from HBM exactly once (1 read + 1 write total).
        rb = n_pad8
    else:
        rb = min(row_block, max(8, (avail // per_row) // 8 * 8))
        rb = min(rb, n_pad8)

    n_pad = _round_up(N, rb)
    if n_pad != N:
        x = jnp.pad(x, ((0, n_pad - N), (0, 0)))
    num_tiles = n_pad // rb

    kernel = functools.partial(feature_mlp_kernel, n_rows=N, n_pad=n_pad, row_block=rb)

    def const_spec(a):
        return pl.BlockSpec(a.shape, lambda p, t: (0, 0))        # resident, DMA'd once

    out = pl.pallas_call(
        kernel,
        out_shape=jax.ShapeDtypeStruct((n_pad, out_dim), jnp.float32),
        grid_spec=pltpu.PrefetchScalarGridSpec(
            num_scalar_prefetch=0,
            grid=(3, num_tiles),                                 # (phase, row tile)
            in_specs=[
                pl.BlockSpec((rb, in_dim), lambda p, t: (t, 0)),  # x: streamed tiles
                const_spec(w1), const_spec(w2), const_spec(w3),
                const_spec(params["g1"]), const_spec(params["be1"]),
                const_spec(params["g2"]), const_spec(params["be2"]),
                const_spec(params["b3"]),
            ],
            # Output blocks are only written (and flushed) in the final phase.
            out_specs=pl.BlockSpec((rb, out_dim),
                                   lambda p, t: (jnp.where(p == 2, t, 0), 0)),
            scratch_shapes=[pltpu.VMEM((8, H1), jnp.float32)],   # BN stats / folded scale-shift
        ),
        compiler_params=pltpu.CompilerParams(
            # Both grid axes are sequential: stats accumulate across tiles and phases.
            # TODO(synk): on v7x the row-tile axis could be split across the 2 TCs with
            # per-core partial stats + a CMEM reduction; left single-core for portability.
            dimension_semantics=("arbitrary", "arbitrary"),
            vmem_limit_bytes=int(budget)),
    )(x, w1, w2, w3, params["g1"], params["be1"],
      params["g2"], params["be2"], params["b3"])
    # TODO(synk): training-mode BatchNorm also updates running_mean/running_var
    # buffers; only the forward output is produced here.
    return out[:N] if n_pad != N else out


def init_params(key, in_dim=32, out_dim=32):
    """Deterministic synthetic parameters (PyTorch-like uniform init)."""
    ks = jax.random.split(key, 10)

    def linear(kw, kb, fan_in, fan_out):
        bound = 1.0 / (fan_in ** 0.5)
        w = jax.random.uniform(kw, (fan_in, fan_out), jnp.float32, -bound, bound)
        b = jax.random.uniform(kb, (1, fan_out), jnp.float32, -bound, bound)
        return w, b

    w1, b1 = linear(ks[0], ks[1], in_dim, H1)
    w2, b2 = linear(ks[2], ks[3], H1, H2)
    w3, b3 = linear(ks[4], ks[5], H2, out_dim)
    g1 = 1.0 + 0.1 * jax.random.normal(ks[6], (1, H1), jnp.float32)
    be1 = 0.1 * jax.random.normal(ks[7], (1, H1), jnp.float32)
    g2 = 1.0 + 0.1 * jax.random.normal(ks[8], (1, H2), jnp.float32)
    be2 = 0.1 * jax.random.normal(ks[9], (1, H2), jnp.float32)
    return dict(w1=w1, b1=b1, g1=g1, be1=be1,
                w2=w2, b2=b2, g2=g2, be2=be2,
                w3=w3, b3=b3)


def feature_mlp_ref(x, p):
    """Pure-JAX reference matching the PyTorch training-mode forward (uses b1/b2)."""
    def bn(h, g, b):
        mu = jnp.mean(h, axis=0, keepdims=True)
        var = jnp.mean((h - mu) ** 2, axis=0, keepdims=True)
        return (h - mu) / jnp.sqrt(var + BN_EPS) * g + b

    h = jnp.maximum(bn(x @ p["w1"] + p["b1"], p["g1"], p["be1"]), 0.0)
    h = jnp.maximum(bn(h @ p["w2"] + p["b2"], p["g2"], p["be2"]), 0.0)
    return jax.nn.sigmoid(h @ p["w3"] + p["b3"])


if __name__ == "__main__":
    key = jax.random.PRNGKey(0)
    k_x, k_p = jax.random.split(key)

    N, in_dim, out_dim = 8, 32, 32
    x = jax.random.normal(k_x, (N, in_dim), jnp.float32)
    params = init_params(k_p, in_dim=in_dim, out_dim=out_dim)

    out = jax.block_until_ready(feature_mlp(x, params))
    ref = feature_mlp_ref(x, params)

    assert out.shape == (N, out_dim)
    err = float(jnp.max(jnp.abs(out - ref)))
    # Bias-drop is mathematically exact; single-pass (clamped) variance and the
    # tanh-form sigmoid only introduce rounding-level (<<1e-5) deviations.
    assert err < 1e-4, f"mismatch vs reference: {err}"

    print("KERNEL_OK")
</pallas_src>

<mosaic_0001>
module attributes {stable_mosaic.version = 11 : i64} {
  func.func @feature_mlp_kernel(%arg0: i32, %arg1: i32, %arg2: memref<8x32xf32, #tpu.memory_space<vmem>>, %arg3: memref<32x32xf32, #tpu.memory_space<vmem>>, %arg4: memref<32x16xf32, #tpu.memory_space<vmem>>, %arg5: memref<16x32xf32, #tpu.memory_space<vmem>>, %arg6: memref<1x32xf32, #tpu.memory_space<vmem>>, %arg7: memref<1x32xf32, #tpu.memory_space<vmem>>, %arg8: memref<1x16xf32, #tpu.memory_space<vmem>>, %arg9: memref<1x16xf32, #tpu.memory_space<vmem>>, %arg10: memref<1x32xf32, #tpu.memory_space<vmem>>, %arg11: memref<8x32xf32, #tpu.memory_space<vmem>>, %arg12: memref<8x32xf32, #tpu.memory_space<vmem>>) attributes {dimension_semantics = [#tpu.dimension_semantics<arbitrary>, #tpu.dimension_semantics<arbitrary>], iteration_bounds = array<i64: 3, 1>, scalar_prefetch = 0 : i64, scratch_operands = 1 : i64, tpu.core_type = #tpu.core_type<tc>, window_params = [{transform_indices = @transform_0, window_bounds = array<i64: 8, 32>}, {pipeline_mode = #tpu.pipeline_mode<synchronous>, transform_indices = @transform_1, window_bounds = array<i64: 32, 32>}, {pipeline_mode = #tpu.pipeline_mode<synchronous>, transform_indices = @transform_2, window_bounds = array<i64: 32, 16>}, {pipeline_mode = #tpu.pipeline_mode<synchronous>, transform_indices = @transform_3, window_bounds = array<i64: 16, 32>}, {pipeline_mode = #tpu.pipeline_mode<synchronous>, transform_indices = @transform_4, window_bounds = array<i64: 1, 32>}, {pipeline_mode = #tpu.pipeline_mode<synchronous>, transform_indices = @transform_5, window_bounds = array<i64: 1, 32>}, {pipeline_mode = #tpu.pipeline_mode<synchronous>, transform_indices = @transform_6, window_bounds = array<i64: 1, 16>}, {pipeline_mode = #tpu.pipeline_mode<synchronous>, transform_indices = @transform_7, window_bounds = array<i64: 1, 16>}, {pipeline_mode = #tpu.pipeline_mode<synchronous>, transform_indices = @transform_8, window_bounds = array<i64: 1, 32>}, {transform_indices = @transform_9, window_bounds = array<i64: 8, 32>}]} {
    %c0 = arith.constant 0 : index
    %c0_0 = arith.constant 0 : index
    %0 = vector.load %arg2[%c0, %c0_0] : memref<8x32xf32, #tpu.memory_space<vmem>>, vector<8x32xf32>
    %c0_1 = arith.constant 0 : index
    %c0_2 = arith.constant 0 : index
    %1 = vector.load %arg3[%c0_1, %c0_2] : memref<32x32xf32, #tpu.memory_space<vmem>>, vector<32x32xf32>
    %c0_3 = arith.constant 0 : index
    %c0_4 = arith.constant 0 : index
    %2 = vector.load %arg4[%c0_3, %c0_4] : memref<32x16xf32, #tpu.memory_space<vmem>>, vector<32x16xf32>
    %c0_i32 = arith.constant 0 : i32
    %3 = arith.cmpi eq, %arg0, %c0_i32 : i32
    %c0_i32_5 = arith.constant 0 : i32
    %4 = arith.cmpi eq, %arg1, %c0_i32_5 : i32
    %5 = arith.andi %3, %4 : i1
    %6 = arith.extui %5 : i1 to i32
    %c0_i32_6 = arith.constant 0 : i32
    %7 = arith.cmpi ne, %6, %c0_i32_6 : i32
    scf.if %7 {
      %cst = arith.constant 0.000000e+00 : f32
      %27 = vector.broadcast %cst : f32 to vector<8x32xf32>
      %c0_17 = arith.constant 0 : index
      %c0_18 = arith.constant 0 : index
      %28 = vector.load %arg12[%c0_17, %c0_18] : memref<8x32xf32, #tpu.memory_space<vmem>>, vector<8x32xf32>
      tpu.vector_store %arg12[%c0_17, %c0_18], %27 {strides = array<i32>} : memref<8x32xf32, #tpu.memory_space<vmem>>, vector<8x32xf32>,
      %cst_19 = arith.constant 0.000000e+00 : f32
      %29 = vector.broadcast %cst_19 : f32 to vector<8x32xf32>
      %c0_20 = arith.constant 0 : index
      %c0_21 = arith.constant 0 : index
      %30 = vector.load %arg11[%c0_20, %c0_21] : memref<8x32xf32, #tpu.memory_space<vmem>>, vector<8x32xf32>
      tpu.vector_store %arg11[%c0_20, %c0_21], %29 {strides = array<i32>} : memref<8x32xf32, #tpu.memory_space<vmem>>, vector<8x32xf32>,
    } else {
    }
    %c1_i32 = arith.constant 1 : i32
    %8 = arith.cmpi eq, %arg0, %c1_i32 : i32
    %c0_i32_7 = arith.constant 0 : i32
    %9 = arith.cmpi eq, %arg1, %c0_i32_7 : i32
    %10 = arith.andi %8, %9 : i1
    %11 = arith.extui %10 : i1 to i32
    %c0_i32_8 = arith.constant 0 : i32
    %12 = arith.cmpi ne, %11, %c0_i32_8 : i32
    scf.if %12 {
      %c0_17 = arith.constant 0 : index
      %c0_18 = arith.constant 0 : index
      %27 = vector.load %arg12[%c0_17, %c0_18] : memref<8x32xf32, #tpu.memory_space<vmem>>, vector<1x32xf32>
      %c1 = arith.constant 1 : index
      %c0_19 = arith.constant 0 : index
      %28 = vector.load %arg12[%c1, %c0_19] : memref<8x32xf32, #tpu.memory_space<vmem>>, vector<1x32xf32>
      %c0_20 = arith.constant 0 : index
      %c0_21 = arith.constant 0 : index
      %29 = vector.load %arg6[%c0_20, %c0_21] : memref<1x32xf32, #tpu.memory_space<vmem>>, vector<1x32xf32>
      %c0_22 = arith.constant 0 : index
      %c0_23 = arith.constant 0 : index
      %30 = vector.load %arg7[%c0_22, %c0_23] : memref<1x32xf32, #tpu.memory_space<vmem>>, vector<1x32xf32>
      %cst = arith.constant 1.250000e-01 : f32
      %31 = vector.broadcast %cst : f32 to vector<1x32xf32>
      %32 = arith.mulf %27, %31 : vector<1x32xf32>
      %cst_24 = arith.constant 1.250000e-01 : f32
      %33 = vector.broadcast %cst_24 : f32 to vector<1x32xf32>
      %34 = arith.mulf %28, %33 : vector<1x32xf32>
      %35 = arith.mulf %32, %32 : vector<1x32xf32>
      %36 = arith.subf %34, %35 : vector<1x32xf32>
      %cst_25 = arith.constant 0.000000e+00 : f32
      %37 = vector.broadcast %cst_25 : f32 to vector<1x32xf32>
      %38 = arith.maximumf %36, %37 : vector<1x32xf32>
      %cst_26 = arith.constant 9.99999974E-6 : f32
      %39 = vector.broadcast %cst_26 : f32 to vector<1x32xf32>
      %40 = arith.addf %38, %39 : vector<1x32xf32>
      %41 = math.rsqrt %40 : vector<1x32xf32>
      %42 = arith.mulf %29, %41 : vector<1x32xf32>
      %43 = arith.mulf %32, %42 : vector<1x32xf32>
      %44 = arith.subf %30, %43 : vector<1x32xf32>
      %45 = tpu.concatenate %42, %44 in 0 : vector<1x32xf32>, vector<1x32xf32> -> vector<2x32xf32>
      %c4 = arith.constant 4 : index
      %c0_27 = arith.constant 0 : index
      %46 = vector.load %arg12[%c4, %c0_27] : memref<8x32xf32, #tpu.memory_space<vmem>>, vector<2x32xf32>
      tpu.vector_store %arg12[%c4, %c0_27], %45 {strides = array<i32>} : memref<8x32xf32, #tpu.memory_space<vmem>>, vector<2x32xf32>,
    } else {
    }
    %c2_i32 = arith.constant 2 : i32
    %13 = arith.cmpi eq, %arg0, %c2_i32 : i32
    %c0_i32_9 = arith.constant 0 : i32
    %14 = arith.cmpi eq, %arg1, %c0_i32_9 : i32
    %15 = arith.andi %13, %14 : i1
    %16 = arith.extui %15 : i1 to i32
    %c0_i32_10 = arith.constant 0 : i32
    %17 = arith.cmpi ne, %16, %c0_i32_10 : i32
    scf.if %17 {
      %c2 = arith.constant 2 : index
      %c0_17 = arith.constant 0 : index
      %27 = vector.load %arg12[%c2, %c0_17] : memref<8x32xf32, #tpu.memory_space<vmem>>, vector<1x16xf32>
      %c3 = arith.constant 3 : index
      %c0_18 = arith.constant 0 : index
      %28 = vector.load %arg12[%c3, %c0_18] : memref<8x32xf32, #tpu.memory_space<vmem>>, vector<1x16xf32>
      %c0_19 = arith.constant 0 : index
      %c0_20 = arith.constant 0 : index
      %29 = vector.load %arg8[%c0_19, %c0_20] : memref<1x16xf32, #tpu.memory_space<vmem>>, vector<1x16xf32>
      %c0_21 = arith.constant 0 : index
      %c0_22 = arith.constant 0 : index
      %30 = vector.load %arg9[%c0_21, %c0_22] : memref<1x16xf32, #tpu.memory_space<vmem>>, vector<1x16xf32>
      %cst = arith.constant 1.250000e-01 : f32
      %31 = vector.broadcast %cst : f32 to vector<1x16xf32>
      %32 = arith.mulf %27, %31 : vector<1x16xf32>
      %cst_23 = arith.constant 1.250000e-01 : f32
      %33 = vector.broadcast %cst_23 : f32 to vector<1x16xf32>
      %34 = arith.mulf %28, %33 : vector<1x16xf32>
      %35 = arith.mulf %32, %32 : vector<1x16xf32>
      %36 = arith.subf %34, %35 : vector<1x16xf32>
      %cst_24 = arith.constant 0.000000e+00 : f32
      %37 = vector.broadcast %cst_24 : f32 to vector<1x16xf32>
      %38 = arith.maximumf %36, %37 : vector<1x16xf32>
      %cst_25 = arith.constant 9.99999974E-6 : f32
      %39 = vector.broadcast %cst_25 : f32 to vector<1x16xf32>
      %40 = arith.addf %38, %39 : vector<1x16xf32>
      %41 = math.rsqrt %40 : vector<1x16xf32>
      %42 = arith.mulf %29, %41 : vector<1x16xf32>
      %43 = arith.mulf %32, %42 : vector<1x16xf32>
      %44 = arith.subf %30, %43 : vector<1x16xf32>
      %45 = tpu.concatenate %42, %44 in 0 : vector<1x16xf32>, vector<1x16xf32> -> vector<2x16xf32>
      %c6 = arith.constant 6 : index
      %c0_26 = arith.constant 0 : index
      %46 = vector.load %arg12[%c6, %c0_26] : memref<8x32xf32, #tpu.memory_space<vmem>>, vector<2x16xf32>
      tpu.vector_store %arg12[%c6, %c0_26], %45 {strides = array<i32>} : memref<8x32xf32, #tpu.memory_space<vmem>>, vector<2x16xf32>,
    } else {
    }
    %c0_i32_11 = arith.constant 0 : i32
    %18 = arith.cmpi eq, %arg0, %c0_i32_11 : i32
    %19 = arith.extui %18 : i1 to i32
    %c0_i32_12 = arith.constant 0 : i32
    %20 = arith.cmpi ne, %19, %c0_i32_12 : i32
    scf.if %20 {
      %cst = arith.constant dense<0.000000e+00> : vector<8x32xf32>
      %27 = tpu.matmul %0, %1, %cst {dimension_numbers = #tpu.dot_dimension_numbers<[1], [0], [0], [1], [0, 0, 1, 1], [], []>} : vector<8x32xf32>, vector<32x32xf32>, vector<8x32xf32> -> vector<8x32xf32>
      %cst_17 = arith.constant dense<0.000000e+00> : vector<32xf32>
      %28 = vector.multi_reduction <add>, %27, %cst_17 [0] : vector<8x32xf32> to vector<32xf32>
      %29 = vector.shape_cast %28 : vector<32xf32> to vector<1x32xf32>
      %30 = arith.mulf %27, %27 : vector<8x32xf32>
      %cst_18 = arith.constant dense<0.000000e+00> : vector<32xf32>
      %31 = vector.multi_reduction <add>, %30, %cst_18 [0] : vector<8x32xf32> to vector<32xf32>
      %32 = vector.shape_cast %31 : vector<32xf32> to vector<1x32xf32>
      %33 = tpu.concatenate %29, %32 in 0 : vector<1x32xf32>, vector<1x32xf32> -> vector<2x32xf32>
      %c0_19 = arith.constant 0 : index
      %c0_20 = arith.constant 0 : index
      %34 = vector.load %arg12[%c0_19, %c0_20] : memref<8x32xf32, #tpu.memory_space<vmem>>, vector<2x32xf32>
      %35 = arith.addf %34, %33 : vector<2x32xf32>
      %c0_21 = arith.constant 0 : index
      %c0_22 = arith.constant 0 : index
      %36 = vector.load %arg12[%c0_21, %c0_22] : memref<8x32xf32, #tpu.memory_space<vmem>>, vector<2x32xf32>
      tpu.vector_store %arg12[%c0_21, %c0_22], %35 {strides = array<i32>} : memref<8x32xf32, #tpu.memory_space<vmem>>, vector<2x32xf32>,
    } else {
    }
    %c1_i32_13 = arith.constant 1 : i32
    %21 = arith.cmpi eq, %arg0, %c1_i32_13 : i32
    %22 = arith.extui %21 : i1 to i32
    %c0_i32_14 = arith.constant 0 : i32
    %23 = arith.cmpi ne, %22, %c0_i32_14 : i32
    scf.if %23 {
      %c4 = arith.constant 4 : index
      %c0_17 = arith.constant 0 : index
      %27 = vector.load %arg12[%c4, %c0_17] : memref<8x32xf32, #tpu.memory_space<vmem>>, vector<1x32xf32>
      %c5 = arith.constant 5 : index
      %c0_18 = arith.constant 0 : index
      %28 = vector.load %arg12[%c5, %c0_18] : memref<8x32xf32, #tpu.memory_space<vmem>>, vector<1x32xf32>
      %cst = arith.constant dense<0.000000e+00> : vector<8x32xf32>
      %29 = tpu.matmul %0, %1, %cst {dimension_numbers = #tpu.dot_dimension_numbers<[1], [0], [0], [1], [0, 0, 1, 1], [], []>} : vector<8x32xf32>, vector<32x32xf32>, vector<8x32xf32> -> vector<8x32xf32>
      %30 = vector.broadcast %27 : vector<1x32xf32> to vector<8x32xf32>
      %31 = arith.mulf %29, %30 : vector<8x32xf32>
      %32 = vector.broadcast %28 : vector<1x32xf32> to vector<8x32xf32>
      %33 = arith.addf %31, %32 : vector<8x32xf32>
      %cst_19 = arith.constant 0.000000e+00 : f32
      %34 = vector.broadcast %cst_19 : f32 to vector<8x32xf32>
      %35 = arith.maximumf %33, %34 : vector<8x32xf32>
      %cst_20 = arith.constant dense<0.000000e+00> : vector<8x16xf32>
      %36 = tpu.matmul %35, %2, %cst_20 {dimension_numbers = #tpu.dot_dimension_numbers<[1], [0], [0], [1], [0, 0, 1, 1], [], []>} : vector<8x32xf32>, vector<32x16xf32>, vector<8x16xf32> -> vector<8x16xf32>
      %cst_21 = arith.constant dense<0.000000e+00> : vector<16xf32>
      %37 = vector.multi_reduction <add>, %36, %cst_21 [0] : vector<8x16xf32> to vector<16xf32>
      %38 = vector.shape_cast %37 : vector<16xf32> to vector<1x16xf32>
      %39 = arith.mulf %36, %36 : vector<8x16xf32>
      %cst_22 = arith.constant dense<0.000000e+00> : vector<16xf32>
      %40 = vector.multi_reduction <add>, %39, %cst_22 [0] : vector<8x16xf32> to vector<16xf32>
      %41 = vector.shape_cast %40 : vector<16xf32> to vector<1x16xf32>
      %42 = tpu.concatenate %38, %41 in 0 : vector<1x16xf32>, vector<1x16xf32> -> vector<2x16xf32>
      %c2 = arith.constant 2 : index
      %c0_23 = arith.constant 0 : index
      %43 = vector.load %arg12[%c2, %c0_23] : memref<8x32xf32, #tpu.memory_space<vmem>>, vector<2x16xf32>
      %44 = arith.addf %43, %42 : vector<2x16xf32>
      %c2_24 = arith.constant 2 : index
      %c0_25 = arith.constant 0 : index
      %45 = vector.load %arg12[%c2_24, %c0_25] : memref<8x32xf32, #tpu.memory_space<vmem>>, vector<2x16xf32>
      tpu.vector_store %arg12[%c2_24, %c0_25], %44 {strides = array<i32>} : memref<8x32xf32, #tpu.memory_space<vmem>>, vector<2x16xf32>,
    } else {
    }
    %c2_i32_15 = arith.constant 2 : i32
    %24 = arith.cmpi eq, %arg0, %c2_i32_15 : i32
    %25 = arith.extui %24 : i1 to i32
    %c0_i32_16 = arith.constant 0 : i32
    %26 = arith.cmpi ne, %25, %c0_i32_16 : i32
    scf.if %26 {
      %c4 = arith.constant 4 : index
      %c0_17 = arith.constant 0 : index
      %27 = vector.load %arg12[%c4, %c0_17] : memref<8x32xf32, #tpu.memory_space<vmem>>, vector<1x32xf32>
      %c5 = arith.constant 5 : index
      %c0_18 = arith.constant 0 : index
      %28 = vector.load %arg12[%c5, %c0_18] : memref<8x32xf32, #tpu.memory_space<vmem>>, vector<1x32xf32>
      %c6 = arith.constant 6 : index
      %c0_19 = arith.constant 0 : index
      %29 = vector.load %arg12[%c6, %c0_19] : memref<8x32xf32, #tpu.memory_space<vmem>>, vector<1x16xf32>
      %c7 = arith.constant 7 : index
      %c0_20 = arith.constant 0 : index
      %30 = vector.load %arg12[%c7, %c0_20] : memref<8x32xf32, #tpu.memory_space<vmem>>, vector<1x16xf32>
      %cst = arith.constant dense<0.000000e+00> : vector<8x32xf32>
      %31 = tpu.matmul %0, %1, %cst {dimension_numbers = #tpu.dot_dimension_numbers<[1], [0], [0], [1], [0, 0, 1, 1], [], []>} : vector<8x32xf32>, vector<32x32xf32>, vector<8x32xf32> -> vector<8x32xf32>
      %32 = vector.broadcast %27 : vector<1x32xf32> to vector<8x32xf32>
      %33 = arith.mulf %31, %32 : vector<8x32xf32>
      %34 = vector.broadcast %28 : vector<1x32xf32> to vector<8x32xf32>
      %35 = arith.addf %33, %34 : vector<8x32xf32>
      %cst_21 = arith.constant 0.000000e+00 : f32
      %36 = vector.broadcast %cst_21 : f32 to vector<8x32xf32>
      %37 = arith.maximumf %35, %36 : vector<8x32xf32>
      %cst_22 = arith.constant dense<0.000000e+00> : vector<8x16xf32>
      %38 = tpu.matmul %37, %2, %cst_22 {dimension_numbers = #tpu.dot_dimension_numbers<[1], [0], [0], [1], [0, 0, 1, 1], [], []>} : vector<8x32xf32>, vector<32x16xf32>, vector<8x16xf32> -> vector<8x16xf32>
      %39 = vector.broadcast %29 : vector<1x16xf32> to vector<8x16xf32>
      %40 = arith.mulf %38, %39 : vector<8x16xf32>
      %41 = vector.broadcast %30 : vector<1x16xf32> to vector<8x16xf32>
      %42 = arith.addf %40, %41 : vector<8x16xf32>
      %cst_23 = arith.constant 0.000000e+00 : f32
      %43 = vector.broadcast %cst_23 : f32 to vector<8x16xf32>
      %44 = arith.maximumf %42, %43 : vector<8x16xf32>
      %c0_24 = arith.constant 0 : index
      %c0_25 = arith.constant 0 : index
      %45 = vector.load %arg5[%c0_24, %c0_25] : memref<16x32xf32, #tpu.memory_space<vmem>>, vector<16x32xf32>
      %cst_26 = arith.constant dense<0.000000e+00> : vector<8x32xf32>
      %46 = tpu.matmul %44, %45, %cst_26 {dimension_numbers = #tpu.dot_dimension_numbers<[1], [0], [0], [1], [0, 0, 1, 1], [], []>} : vector<8x16xf32>, vector<16x32xf32>, vector<8x32xf32> -> vector<8x32xf32>
      %c0_27 = arith.constant 0 : index
      %c0_28 = arith.constant 0 : index
      %47 = vector.load %arg10[%c0_27, %c0_28] : memref<1x32xf32, #tpu.memory_space<vmem>>, vector<1x32xf32>
      %48 = vector.broadcast %47 : vector<1x32xf32> to vector<8x32xf32>
      %49 = arith.addf %46, %48 : vector<8x32xf32>
      %cst_29 = arith.constant 5.000000e-01 : f32
      %50 = vector.broadcast %cst_29 : f32 to vector<8x32xf32>
      %51 = arith.mulf %50, %49 : vector<8x32xf32>
      %52 = math.tanh %51 : vector<8x32xf32>
      %cst_30 = arith.constant 5.000000e-01 : f32
      %53 = vector.broadcast %cst_30 : f32 to vector<8x32xf32>
      %54 = arith.mulf %53, %52 : vector<8x32xf32>
      %cst_31 = arith.constant 5.000000e-01 : f32
      %55 = vector.broadcast %cst_31 : f32 to vector<8x32xf32>
      %56 = arith.addf %54, %55 : vector<8x32xf32>
      %c0_32 = arith.constant 0 : index
      %c0_33 = arith.constant 0 : index
      %57 = vector.load %arg11[%c0_32, %c0_33] : memref<8x32xf32, #tpu.memory_space<vmem>>, vector<8x32xf32>
      tpu.vector_store %arg11[%c0_32, %c0_33], %56 {strides = array<i32>} : memref<8x32xf32, #tpu.memory_space<vmem>>, vector<8x32xf32>,
    } else {
    }
    return
  }
  func.func @transform_0(%arg0: i32, %arg1: i32) -> (i32, i32) {
    %c0_i32 = arith.constant 0 : i32
    %c0_i32_0 = arith.constant 0 : i32
    return %arg1, %c0_i32 : i32, i32
  }
  func.func @transform_1(%arg0: i32, %arg1: i32) -> (i32, i32) {
    %c0_i32 = arith.constant 0 : i32
    %c0_i32_0 = arith.constant 0 : i32
    %c0_i32_1 = arith.constant 0 : i32
    return %c0_i32, %c0_i32_0 : i32, i32
  }
  func.func @transform_2(%arg0: i32, %arg1: i32) -> (i32, i32) {
    %c0_i32 = arith.constant 0 : i32
    %c0_i32_0 = arith.constant 0 : i32
    %c0_i32_1 = arith.constant 0 : i32
    return %c0_i32, %c0_i32_0 : i32, i32
  }
  func.func @transform_3(%arg0: i32, %arg1: i32) -> (i32, i32) {
    %c0_i32 = arith.constant 0 : i32
    %c0_i32_0 = arith.constant 0 : i32
    %c0_i32_1 = arith.constant 0 : i32
    return %c0_i32, %c0_i32_0 : i32, i32
  }
  func.func @transform_4(%arg0: i32, %arg1: i32) -> (i32, i32) {
    %c0_i32 = arith.constant 0 : i32
    %c0_i32_0 = arith.constant 0 : i32
    %c0_i32_1 = arith.constant 0 : i32
    return %c0_i32, %c0_i32_0 : i32, i32
  }
  func.func @transform_5(%arg0: i32, %arg1: i32) -> (i32, i32) {
    %c0_i32 = arith.constant 0 : i32
    %c0_i32_0 = arith.constant 0 : i32
    %c0_i32_1 = arith.constant 0 : i32
    return %c0_i32, %c0_i32_0 : i32, i32
  }
  func.func @transform_6(%arg0: i32, %arg1: i32) -> (i32, i32) {
    %c0_i32 = arith.constant 0 : i32
    %c0_i32_0 = arith.constant 0 : i32
    %c0_i32_1 = arith.constant 0 : i32
    return %c0_i32, %c0_i32_0 : i32, i32
  }
  func.func @transform_7(%arg0: i32, %arg1: i32) -> (i32, i32) {
    %c0_i32 = arith.constant 0 : i32
    %c0_i32_0 = arith.constant 0 : i32
    %c0_i32_1 = arith.constant 0 : i32
    return %c0_i32, %c0_i32_0 : i32, i32
  }
  func.func @transform_8(%arg0: i32, %arg1: i32) -> (i32, i32) {
    %c0_i32 = arith.constant 0 : i32
    %c0_i32_0 = arith.constant 0 : i32
    %c0_i32_1 = arith.constant 0 : i32
    return %c0_i32, %c0_i32_0 : i32, i32
  }
  func.func @transform_9(%arg0: i32, %arg1: i32) -> (i32, i32) {
    %c2_i32 = arith.constant 2 : i32
    %0 = arith.cmpi eq, %arg0, %c2_i32 : i32
    %c0_i32 = arith.constant 0 : i32
    %1 = arith.select %0, %arg1, %c0_i32 : i32
    %c0_i32_0 = arith.constant 0 : i32
    %c0_i32_1 = arith.constant 0 : i32
    return %1, %c0_i32_0 : i32, i32
  }
}

</mosaic_0001>

<llo_original>
// kernel: tpu_custom_call.1
$region0: #{tpu_custom_call.1}
  #allocation0 [shape = 'u32[]', space=smem, size = 0x4, offset = 0x4, fixed_abs, tag = 'smem constant byte address 0x4 - core index']
  #allocation1 [shape = 'u32[144,128]{1,0:T(1,128)}', space=vmem, size = 0x12000, scoped, tag = 'internal scratch']
  #allocation2 [shape = 'f32[8,32]{1,0:T(8,128)}', space=vmem, size = 0x1000, scoped, tag = 'scratch operand']
  %s0 = inlined_call_operand.hbm [shape: f32[8,32], index: 0, kind: input, shape index: {}]
  %s1 = inlined_call_operand.vmem [shape: f32[32,32], index: 1, kind: input, shape index: {}]
  %s2 = inlined_call_operand.vmem [shape: f32[32,16], index: 2, kind: input, shape index: {}]
  %s3 = inlined_call_operand.vmem [shape: f32[16,32], index: 3, kind: input, shape index: {}]
  %s4 = inlined_call_operand.vmem [shape: f32[1,32], index: 4, kind: input, shape index: {}]
  %s5 = inlined_call_operand.vmem [shape: f32[1,32], index: 5, kind: input, shape index: {}]
  %s6 = inlined_call_operand.vmem [shape: f32[1,16], index: 6, kind: input, shape index: {}]
  %s7 = inlined_call_operand.vmem [shape: f32[1,16], index: 7, kind: input, shape index: {}]
  %s8 = inlined_call_operand.vmem [shape: f32[1,32], index: 8, kind: input, shape index: {}]
  %s9 = inlined_call_operand.hbm [shape: f32[8,32], index: 9, kind: output, shape index: {}]
  %s10 = sld [smem:[#allocation0]]
  $region97: #{tpu_custom_call.1} parent=0
    _
  %s12 = ssub.s32 1, %s10
  %s13 = scalar_select 0, %s12, %s10
  $region1: #{tpu_custom_call.1} parent=0
    #allocation3 [shape = 'u8[4096]{0}', space=vmem, size = 0x1000, scoped, tag = 'input window, operand 0, single buffered']
    #allocation4 [shape = 's32[2]{0}', space=sflag, size = 0x8, scoped, tag = 'scoped memory for tpu_custom_call.1']
    #allocation5 [shape = 's32[2]{0}', space=sflag, size = 0x8, scoped, tag = 'scoped memory for tpu_custom_call.1']
    #allocation6 [shape = 'u8[8192]{0}', space=vmem, size = 0x2000, scoped, tag = 'output window, operand 0']
    %14 = vsyncpa [#allocation4], 0
    %15 = vsyncpa [#allocation5], 0
    %s16 = scalar_lea.sflag [#allocation5], 1
    %17 = vsyncpa %s16, 0
    loop: start=0, step=1, limit=5
    $region2: #{tpu_custom_call.1} parent=1 // loop_pre_header
      _
    $region3: #{tpu_custom_call.1} parent=1 // loop_header
      %s19 = sphi 0, %s23
      %p20 = scmp.ge.s32.totalorder %s19, 5
      %s26 = sphi 0, %s38
      %s27 = sphi 0, %s34
      %s28 = sphi 0, %s26
      %s29 = sphi 0, %s27
      %s30 = sphi 0, %s28
      %s31 = sphi 0, %s29
      %s41 = sphi 0, %s43
      %s44 = sphi 0, %s41
      %s45 = sphi 0, %s44
      %s61 = sphi 0, %s45
      %s65 = sphi 0, %s65
      %s67 = sphi 0, %s65
      %s68 = sphi 0, %s67
      %s82 = sphi 0, %s68
      %s86 = sphi 0, %s86
      %s88 = sphi 0, %s86
      %s89 = sphi 0, %s88
      %s103 = sphi 0, %s89
      %s107 = sphi 0, %s107
      %s109 = sphi 0, %s107
      %s110 = sphi 0, %s109
      %s124 = sphi 0, %s110
      %s128 = sphi 0, %s128
      %s130 = sphi 0, %s128
      %s131 = sphi 0, %s130
      %s145 = sphi 0, %s131
      %s149 = sphi 0, %s149
      %s151 = sphi 0, %s149
      %s152 = sphi 0, %s151
      %s166 = sphi 0, %s152
      %s170 = sphi 0, %s170
      %s172 = sphi 0, %s170
      %s173 = sphi 0, %s172
      %s187 = sphi 0, %s173
      %s191 = sphi 0, %s191
      %s193 = sphi 0, %s191
      %s194 = sphi 0, %s193
      %s208 = sphi 0, %s194
      %s212 = sphi 0, %s212
      %s214 = sphi 0, %s212
      %s215 = sphi 0, %s214
      %s229 = sphi 0, %s215
      %s239 = sphi 0, %s241
      %s242 = sphi 0, %s239
      %s243 = sphi 0, %s242
      %s259 = sphi 0, %s243
    $region4: #{tpu_custom_call.1} parent=1 // loop_header_branch
      %22 = sbr.rel (%p20) target = $region8
    $region5: #{tpu_custom_call.1} parent=1 // loop_body
      %s24 = ssub.s32 %s19, 1
      %s25 = ssub.s32 %s19, 2
      %s32 = sadd.s32 1, %s27
      %p33 = scmp.ge.s32.totalorder %s32, 1
      %s34 = scalar_select %p33, 0, %s32
      %s35 = sadd.s32 1, %s26
      %s36 = scalar_select %p33, %s35, %s26
      %p37 = scmp.ge.s32.totalorder %s36, 3
      %s38 = scalar_select %p37, 0, %s36
      %s39 = ssub.s32 %s27, %s34
      %p40 = scmp.eq.s32.totalorder %s39, 0
      %s42 = sadd.s32 %s41, 1
      %s43 = scalar_select %p40, %s41, %s42
      %p46 = pneg %p40
      %p47 = scmp.eq.s32.totalorder %s19, 2
      %p48 = por %p46, %p47
      %p49 = scmp.ne.s32.totalorder %s41, %s44
      %p50 = scmp.eq.s32.totalorder %s19, 0
      %p51 = por %p49, %p50
      %p52 = scmp.ne.s32.totalorder %s41, %s44
      %p53 = scmp.eq.s32.totalorder %s24, 2
      %p54 = por %p52, %p53
      %p55 = scmp.ne.s32.totalorder %s44, %s45
      %p56 = scmp.eq.s32.totalorder %s24, 0
      %p57 = por %p55, %p56
      %p58 = scmp.ne.s32.totalorder %s44, %s45
      %p59 = scmp.eq.s32.totalorder %s25, 2
      %p60 = por %p58, %p59
      %p62 = scmp.ne.s32.totalorder %s45, %s61
      %p63 = scmp.eq.s32.totalorder %s25, 0
      %p64 = por %p62, %p63
      %s66 = sadd.s32 %s65, 1
      %p69 = scmp.eq.s32.totalorder %s19, 2
      %p70 = scmp.ne.s32.totalorder %s65, %s67
      %p71 = scmp.eq.s32.totalorder %s19, 0
      %p72 = por %p70, %p71
      %p73 = scmp.ne.s32.totalorder %s65, %s67
      %p74 = scmp.eq.s32.totalorder %s24, 2
      %p75 = por %p73, %p74
      %p76 = scmp.ne.s32.totalorder %s67, %s68
      %p77 = scmp.eq.s32.totalorder %s24, 0
      %p78 = por %p76, %p77
      %p79 = scmp.ne.s32.totalorder %s67, %s68
      %p80 = scmp.eq.s32.totalorder %s25, 2
      %p81 = por %p79, %p80
      %p83 = scmp.ne.s32.totalorder %s68, %s82
      %p84 = scmp.eq.s32.totalorder %s25, 0
      %p85 = por %p83, %p84
      %s87 = sadd.s32 %s86, 1
      %p90 = scmp.eq.s32.totalorder %s19, 2
      %p91 = scmp.ne.s32.totalorder %s86, %s88
      %p92 = scmp.eq.s32.totalorder %s19, 0
      %p93 = por %p91, %p92
      %p94 = scmp.ne.s32.totalorder %s86, %s88
      %p95 = scmp.eq.s32.totalorder %s24, 2
      %p96 = por %p94, %p95
      %p97 = scmp.ne.s32.totalorder %s88, %s89
      %p98 = scmp.eq.s32.totalorder %s24, 0
      %p99 = por %p97, %p98
      %p100 = scmp.ne.s32.totalorder %s88, %s89
      %p101 = scmp.eq.s32.totalorder %s25, 2
      %p102 = por %p100, %p101
      %p104 = scmp.ne.s32.totalorder %s89, %s103
      %p105 = scmp.eq.s32.totalorder %s25, 0
      %p106 = por %p104, %p105
      %s108 = sadd.s32 %s107, 1
      %p111 = scmp.eq.s32.totalorder %s19, 2
      %p112 = scmp.ne.s32.totalorder %s107, %s109
      %p113 = scmp.eq.s32.totalorder %s19, 0
      %p114 = por %p112, %p113
      %p115 = scmp.ne.s32.totalorder %s107, %s109
      %p116 = scmp.eq.s32.totalorder %s24, 2
      %p117 = por %p115, %p116
      %p118 = scmp.ne.s32.totalorder %s109, %s110
      %p119 = scmp.eq.s32.totalorder %s24, 0
      %p120 = por %p118, %p119
      %p121 = scmp.ne.s32.totalorder %s109, %s110
      %p122 = scmp.eq.s32.totalorder %s25, 2
      %p123 = por %p121, %p122
      %p125 = scmp.ne.s32.totalorder %s110, %s124
      %p126 = scmp.eq.s32.totalorder %s25, 0
      %p127 = por %p125, %p126
      %s129 = sadd.s32 %s128, 1
      %p132 = scmp.eq.s32.totalorder %s19, 2
      %p133 = scmp.ne.s32.totalorder %s128, %s130
      %p134 = scmp.eq.s32.totalorder %s19, 0
      %p135 = por %p133, %p134
      %p136 = scmp.ne.s32.totalorder %s128, %s130
      %p137 = scmp.eq.s32.totalorder %s24, 2
      %p138 = por %p136, %p137
      %p139 = scmp.ne.s32.totalorder %s130, %s131
      %p140 = scmp.eq.s32.totalorder %s24, 0
      %p141 = por %p139, %p140
      %p142 = scmp.ne.s32.totalorder %s130, %s131
      %p143 = scmp.eq.s32.totalorder %s25, 2
      %p144 = por %p142, %p143
      %p146 = scmp.ne.s32.totalorder %s131, %s145
      %p147 = scmp.eq.s32.totalorder %s25, 0
      %p148 = por %p146, %p147
      %s150 = sadd.s32 %s149, 1
      %p153 = scmp.eq.s32.totalorder %s19, 2
      %p154 = scmp.ne.s32.totalorder %s149, %s151
      %p155 = scmp.eq.s32.totalorder %s19, 0
      %p156 = por %p154, %p155
      %p157 = scmp.ne.s32.totalorder %s149, %s151
      %p158 = scmp.eq.s32.totalorder %s24, 2
      %p159 = por %p157, %p158
      %p160 = scmp.ne.s32.totalorder %s151, %s152
      %p161 = scmp.eq.s32.totalorder %s24, 0
      %p162 = por %p160, %p161
      %p163 = scmp.ne.s32.totalorder %s151, %s152
      %p164 = scmp.eq.s32.totalorder %s25, 2
      %p165 = por %p163, %p164
      %p167 = scmp.ne.s32.totalorder %s152, %s166
      %p168 = scmp.eq.s32.totalorder %s25, 0
      %p169 = por %p167, %p168
      %s171 = sadd.s32 %s170, 1
      %p174 = scmp.eq.s32.totalorder %s19, 2
      %p175 = scmp.ne.s32.totalorder %s170, %s172
      %p176 = scmp.eq.s32.totalorder %s19, 0
      %p177 = por %p175, %p176
      %p178 = scmp.ne.s32.totalorder %s170, %s172
      %p179 = scmp.eq.s32.totalorder %s24, 2
      %p180 = por %p178, %p179
      %p181 = scmp.ne.s32.totalorder %s172, %s173
      %p182 = scmp.eq.s32.totalorder %s24, 0
      %p183 = por %p181, %p182
      %p184 = scmp.ne.s32.totalorder %s172, %s173
      %p185 = scmp.eq.s32.totalorder %s25, 2
      %p186 = por %p184, %p185
      %p188 = scmp.ne.s32.totalorder %s173, %s187
      %p189 = scmp.eq.s32.totalorder %s25, 0
      %p190 = por %p188, %p189
      %s192 = sadd.s32 %s191, 1
      %p195 = scmp.eq.s32.totalorder %s19, 2
      %p196 = scmp.ne.s32.totalorder %s191, %s193
      %p197 = scmp.eq.s32.totalorder %s19, 0
      %p198 = por %p196, %p197
      %p199 = scmp.ne.s32.totalorder %s191, %s193
      %p200 = scmp.eq.s32.totalorder %s24, 2
      %p201 = por %p199, %p200
      %p202 = scmp.ne.s32.totalorder %s193, %s194
      %p203 = scmp.eq.s32.totalorder %s24, 0
      %p204 = por %p202, %p203
      %p205 = scmp.ne.s32.totalorder %s193, %s194
      %p206 = scmp.eq.s32.totalorder %s25, 2
      %p207 = por %p205, %p206
      %p209 = scmp.ne.s32.totalorder %s194, %s208
      %p210 = scmp.eq.s32.totalorder %s25, 0
      %p211 = por %p209, %p210
      %s213 = sadd.s32 %s212, 1
      %p216 = scmp.eq.s32.totalorder %s19, 2
      %p217 = scmp.ne.s32.totalorder %s212, %s214
      %p218 = scmp.eq.s32.totalorder %s19, 0
      %p219 = por %p217, %p218
      %p220 = scmp.ne.s32.totalorder %s212, %s214
      %p221 = scmp.eq.s32.totalorder %s24, 2
      %p222 = por %p220, %p221
      %p223 = scmp.ne.s32.totalorder %s214, %s215
      %p224 = scmp.eq.s32.totalorder %s24, 0
      %p225 = por %p223, %p224
      %p226 = scmp.ne.s32.totalorder %s214, %s215
      %p227 = scmp.eq.s32.totalorder %s25, 2
      %p228 = por %p226, %p227
      %p230 = scmp.ne.s32.totalorder %s215, %s229
      %p231 = scmp.eq.s32.totalorder %s25, 0
      %p232 = por %p230, %p231
      %p233 = scmp.eq.s32.totalorder %s26, 2
      %s234 = scalar_select %p233, %s27, 0
      %p235 = scmp.eq.s32.totalorder %s38, 2
      %s236 = scalar_select %p235, %s34, 0
      %s237 = ssub.s32 %s234, %s236
      %p238 = scmp.eq.s32.totalorder %s237, 0
      %s240 = sadd.s32 %s239, 1
      %s241 = scalar_select %p238, %s239, %s240
      %p244 = pneg %p238
      %p245 = scmp.eq.s32.totalorder %s19, 2
      %p246 = por %p244, %p245
      %p247 = scmp.ne.s32.totalorder %s239, %s242
      %p248 = scmp.eq.s32.totalorder %s19, 0
      %p249 = por %p247, %p248
      %p250 = scmp.ne.s32.totalorder %s239, %s242
      %p251 = scmp.eq.s32.totalorder %s24, 2
      %p252 = por %p250, %p251
      %p253 = scmp.ne.s32.totalorder %s242, %s243
      %p254 = scmp.eq.s32.totalorder %s24, 0
      %p255 = por %p253, %p254
      %p256 = scmp.ne.s32.totalorder %s242, %s243
      %p257 = scmp.eq.s32.totalorder %s25, 2
      %p258 = por %p256, %p257
      %p260 = scmp.ne.s32.totalorder %s243, %s259
      %p261 = scmp.eq.s32.totalorder %s25, 0
      %p262 = por %p260, %p261
      %p263 = scmp.le.s32.totalorder 1, %s19
      %p264 = scmp.lt.s32.totalorder %s19, 4
      %p265 = pnand %p263, %p264
      %p266 = pneg %p265
      // Predicated region
      $region9: #{tpu_custom_call.1} parent=5 // pred_check
        _
      $region10: #{tpu_custom_call.1} parent=5 // pred_check_branch
        %268 = sbr.rel (%p265) target = $region12
      $region11: #{tpu_custom_call.1} parent=5 // pred_region
        %s269 = ssub.s32 %s19, 1
        // Predicated region
        $region13: #{tpu_custom_call.1} parent=11 // pred_check
          %p270 = pneg %p57
        $region14: #{tpu_custom_call.1} parent=11 // pred_check_branch
          %272 = sbr.rel (%p270) target = $region16
        $region15: #{tpu_custom_call.1} parent=11 // pred_region
          %s274 = ssub.s32 128, 128
          %275 = vsyncadd [#allocation4], %s274
          %s276 = smul.addr %s29, 128
          %s277 = scalar_lea.hbm %s0, %s276
          %s279 = sshll.u32 [#allocation3], 4
          %s280 = int_to_ptr.vmem [resolvable:$true] %s279
          %282 = dma.hbm_to_vmem [thread:$0]  %s277, 128, %s280, [#allocation4]
        $region16: #{tpu_custom_call.1} parent=11 // pred_fallthru
          _
        // Predicated region
        $region17: #{tpu_custom_call.1} parent=11 // pred_check
          %p283 = pneg %p78
        $region18: #{tpu_custom_call.1} parent=11 // pred_check_branch
          %285 = sbr.rel (%p283) target = $region20
        $region19: #{tpu_custom_call.1} parent=11 // pred_region
          _
        $region20: #{tpu_custom_call.1} parent=11 // pred_fallthru
          _
        // Predicated region
        $region21: #{tpu_custom_call.1} parent=11 // pred_check
          %p286 = pneg %p99
        $region22: #{tpu_custom_call.1} parent=11 // pred_check_branch
          %288 = sbr.rel (%p286) target = $region24
        $region23: #{tpu_custom_call.1} parent=11 // pred_region
          _
        $region24: #{tpu_custom_call.1} parent=11 // pred_fallthru
          _
        // Predicated region
        $region25: #{tpu_custom_call.1} parent=11 // pred_check
          %p289 = pneg %p120
        $region26: #{tpu_custom_call.1} parent=11 // pred_check_branch
          %291 = sbr.rel (%p289) target = $region28
        $region27: #{tpu_custom_call.1} parent=11 // pred_region
          _
        $region28: #{tpu_custom_call.1} parent=11 // pred_fallthru
          _
        // Predicated region
        $region29: #{tpu_custom_call.1} parent=11 // pred_check
          %p292 = pneg %p141
        $region30: #{tpu_custom_call.1} parent=11 // pred_check_branch
          %294 = sbr.rel (%p292) target = $region32
        $region31: #{tpu_custom_call.1} parent=11 // pred_region
          _
        $region32: #{tpu_custom_call.1} parent=11 // pred_fallthru
          _
        // Predicated region
        $region33: #{tpu_custom_call.1} parent=11 // pred_check
          %p295 = pneg %p162
        $region34: #{tpu_custom_call.1} parent=11 // pred_check_branch
          %297 = sbr.rel (%p295) target = $region36
        $region35: #{tpu_custom_call.1} parent=11 // pred_region
          _
        $region36: #{tpu_custom_call.1} parent=11 // pred_fallthru
          _
        // Predicated region
        $region37: #{tpu_custom_call.1} parent=11 // pred_check
          %p298 = pneg %p183
        $region38: #{tpu_custom_call.1} parent=11 // pred_check_branch
          %300 = sbr.rel (%p298) target = $region40
        $region39: #{tpu_custom_call.1} parent=11 // pred_region
          _
        $region40: #{tpu_custom_call.1} parent=11 // pred_fallthru
          _
        // Predicated region
        $region41: #{tpu_custom_call.1} parent=11 // pred_check
          %p301 = pneg %p204
        $region42: #{tpu_custom_call.1} parent=11 // pred_check_branch
          %303 = sbr.rel (%p301) target = $region44
        $region43: #{tpu_custom_call.1} parent=11 // pred_region
          _
        $region44: #{tpu_custom_call.1} parent=11 // pred_fallthru
          _
        // Predicated region
        $region45: #{tpu_custom_call.1} parent=11 // pred_check
          %p304 = pneg %p225
        $region46: #{tpu_custom_call.1} parent=11 // pred_check_branch
          %306 = sbr.rel (%p304) target = $region48
        $region47: #{tpu_custom_call.1} parent=11 // pred_region
          _
        $region48: #{tpu_custom_call.1} parent=11 // pred_fallthru
          _
      $region12: #{tpu_custom_call.1} parent=5 // pred_fallthru
        _
      %p307 = scmp.lt.s32.totalorder %s19, 3
      // Predicated region
      $region49: #{tpu_custom_call.1} parent=5 // pred_check
        %p308 = pneg %p307
      $region50: #{tpu_custom_call.1} parent=5 // pred_check_branch
        %310 = sbr.rel (%p308) target = $region52
      $region51: #{tpu_custom_call.1} parent=5 // pred_region
        _
      $region52: #{tpu_custom_call.1} parent=5 // pred_fallthru
        _
      %p311 = scmp.le.s32.totalorder 1, %s19
      %p312 = scmp.lt.s32.totalorder %s19, 4
      %p313 = pnand %p311, %p312
      %p314 = pneg %p313
      // Predicated region
      $region53: #{tpu_custom_call.1} parent=5 // pred_check
        _
      $region54: #{tpu_custom_call.1} parent=5 // pred_check_branch
        %316 = sbr.rel (%p313) target = $region56
      $region55: #{tpu_custom_call.1} parent=5 // pred_region
        %s317 = ssub.s32 %s19, 1
        // Predicated region
        $region57: #{tpu_custom_call.1} parent=55 // pred_check
          %p318 = pneg %p57
        $region58: #{tpu_custom_call.1} parent=55 // pred_check_branch
          %320 = sbr.rel (%p318) target = $region60
        $region59: #{tpu_custom_call.1} parent=55 // pred_region
          %321 = dma.done [#allocation4], 128
        $region60: #{tpu_custom_call.1} parent=55 // pred_fallthru
          _
        %p322 = pneg %p57
        %p323 = pneg %p54
        %p324 = pneg %p78
        %p325 = pneg %p75
        %p326 = pneg %p99
        %p327 = pneg %p96
        %p328 = pneg %p120
        %p329 = pneg %p117
        %p330 = pneg %p141
        %p331 = pneg %p138
        %p332 = pneg %p162
        %p333 = pneg %p159
        %p334 = pneg %p183
        %p335 = pneg %p180
        %p336 = pneg %p204
        %p337 = pneg %p201
        %p338 = pneg %p225
        %p339 = pneg %p222
        %p340 = pneg %p255
        %p341 = pneg %p252
        %s342 = sand.u32 %s242, 1
        %s343 = scalar_lea.sflag [#allocation5], %s342
        %s344 = sand.u32 %s242, 1
        %s345 = smul.addr %s344, 8
        %s346 = scalar_lea.vmem [#allocation6], %s345
        %p347 = scmp.eq.s32.totalorder %s28, 2
        %s348 = scalar_select %p347, %s29, 0
        %v349 = vld [vmem:[#allocation3] sm:$0xff]
        %v350 = vld [vmem:[%s1] sm:$0xff]
        %v351 = vld [vmem:[%s1 + $0x8] sm:$0xff]
        %v352 = vld [vmem:[%s1 + $0x10] sm:$0xff]
        %v353 = vld [vmem:[%s1 + $0x18] sm:$0xff]
        %v354 = vld [vmem:[%s2] sm:$0xff]
        %v355 = vld [vmem:[%s2 + $0x8] sm:$0xff]
        %v356 = vld [vmem:[%s2 + $0x10] sm:$0xff]
        %v357 = vld [vmem:[%s2 + $0x18] sm:$0xff]
        %p358 = scmp.eq.s32.totalorder %s28, 0
        %p359 = scmp.eq.s32.totalorder %s29, 0
        %p360 = pnand %p358, %p359
        %p361 = pneg %p360
        // Predicated region
        $region61: #{tpu_custom_call.1} parent=55 // pred_check
          _
        $region62: #{tpu_custom_call.1} parent=55 // pred_check_branch
          %363 = sbr.rel (%p360) target = $region64
        $region63: #{tpu_custom_call.1} parent=55 // pred_region
          %vm364 = vcmask 261120
          %365 = vst.msk [vmem:[#allocation2] sm:$0xff] %vm364, 0.0
          %366 = vst.msk [vmem:[%s346] sm:$0xff] %vm364, 0.0
        $region64: #{tpu_custom_call.1} parent=55 // pred_fallthru
          _
        %p367 = scmp.eq.s32.totalorder %s28, 1
        %p368 = pnand %p367, %p359
        %p369 = pneg %p368
        // Predicated region
        $region65: #{tpu_custom_call.1} parent=55 // pred_check
          _
        $region66: #{tpu_custom_call.1} parent=55 // pred_check_branch
          %371 = sbr.rel (%p368) target = $region68
        $region67: #{tpu_custom_call.1} parent=55 // pred_region
          %v372 = vld [vmem:[#allocation2] sm:$0x1]
          %v373 = vld [vmem:[#allocation2 + $0x1] sm:$0x1]
          %v374 = vld [vmem:[%s4] sm:$0x1]
          %v375 = vld [vmem:[%s5] sm:$0x1]
          %v376 = vmul.f32 %v372, 0.125
          %v377 = vmul.f32 %v373, 0.125
          %v378 = vmul.f32 %v376, %v376
          %v379 = vsub.f32 %v377, %v378
          %v380 = vmax.f32 %v379, 0.0
          %v381 = vadd.f32 %v380, 1e-05
          %v382 = vrsqrt.pop %v381
          %v383 = vmul.f32 %v374, %v382
          %v384 = vmul.f32 %v376, %v383
          %v385 = vsub.f32 %v375, %v384
          %v387 = vlaneseq
          %v388 = vshrl.u32 %v387, 7
          %v389 = vsub.s32 0, %v388
          %v390 = vrot.slane %v385, %v389
          %vm392 = vcmask 1040384
          %v393 = vsel %vm392, %v383, %v390
          %vm394 = vcmask 254976
          %395 = vst.msk [vmem:[#allocation2 + $0x4] sm:$0x3] %vm394, %v393
        $region68: #{tpu_custom_call.1} parent=55 // pred_fallthru
          _
        %p396 = scmp.eq.s32.totalorder %s28, 2
        %p397 = pnand %p396, %p359
        %p398 = pneg %p397
        // Predicated region
        $region69: #{tpu_custom_call.1} parent=55 // pred_check
          _
        $region70: #{tpu_custom_call.1} parent=55 // pred_check_branch
          %400 = sbr.rel (%p397) target = $region72
        $region71: #{tpu_custom_call.1} parent=55 // pred_region
          %v401 = vld [vmem:[#allocation2 + $0x2] sm:$0x1]
          %v402 = vld [vmem:[#allocation2 + $0x3] sm:$0x1]
          %v403 = vld [vmem:[%s6] sm:$0x1]
          %v404 = vld [vmem:[%s7] sm:$0x1]
          %v405 = vmul.f32 %v401, 0.125
          %v406 = vmul.f32 %v402, 0.125
          %v407 = vmul.f32 %v405, %v405
          %v408 = vsub.f32 %v406, %v407
          %v409 = vmax.f32 %v408, 0.0
          %v410 = vadd.f32 %v409, 1e-05
          %v411 = vrsqrt.pop %v410
          %v412 = vmul.f32 %v403, %v411
          %v413 = vmul.f32 %v405, %v412
          %v414 = vsub.f32 %v404, %v413
          %v416 = vlaneseq
          %v417 = vshrl.u32 %v416, 7
          %v418 = vsub.s32 0, %v417
          %v419 = vrot.slane %v414, %v418
          %vm421 = vcmask 1040384
          %v422 = vsel %vm421, %v412, %v419
          %vm423 = vcmask 123904
          %424 = vst.msk [vmem:[#allocation2 + $0x6] sm:$0x3] %vm423, %v422
        $region72: #{tpu_custom_call.1} parent=55 // pred_fallthru
          _
        // Predicated region
        $region73: #{tpu_custom_call.1} parent=55 // pred_check
          %p425 = pneg %p358
        $region74: #{tpu_custom_call.1} parent=55 // pred_check_branch
          %427 = sbr.rel (%p425) target = $region76
        $region75: #{tpu_custom_call.1} parent=55 // pred_region
          %vm428 = vcmask 261120
          %v430 = vsel %vm428, %v349, 0
          %432 = vmatprep.subr.mxu0 0.0
          %433 = vmatpush1.msra.mxu0 %v350
          %434 = vmatprep.subr.mxu0 0.0
          %435 = vmatpush1.msra.mxu0 %v351
          %436 = vmatprep.subr.mxu0 0.0
          %437 = vmatpush1.msra.mxu0 %v352
          %438 = vmatprep.subr.mxu0 0.0
          %439 = vmatpush1.msra.mxu0 %v353
          %440 = vmatprep.subr.mxu0 0.0
          %441 = vmatpush1.msra.mxu0 0.0
          %442 = vmatprep.subr.mxu0 0.0
          %443 = vmatpush1.msra.mxu0 0.0
          %444 = vmatprep.subr.mxu0 0.0
          %445 = vmatpush1.msra.mxu0 0.0
          %446 = vmatprep.subr.mxu0 0.0
          %447 = vmatpush1.msra.mxu0 0.0
          %448 = vmatprep.subr.mxu0 0.0
          %449 = vmatpush1.msra.mxu0 0.0
          %450 = vmatprep.subr.mxu0 0.0
          %451 = vmatpush1.msra.mxu0 0.0
          %452 = vmatprep.subr.mxu0 0.0
          %453 = vmatpush1.msra.mxu0 0.0
          %454 = vmatprep.subr.mxu0 0.0
          %455 = vmatpush1.msra.mxu0 0.0
          %456 = vmatprep.subr.mxu0 0.0
          %457 = vmatpush1.msra.mxu0 0.0
          %458 = vmatprep.subr.mxu0 0.0
          %459 = vmatpush1.msra.mxu0 0.0
          %460 = vmatprep.subr.mxu0 0.0
          %461 = vmatpush1.msra.mxu0 0.0
          %462 = vmatprep.subr.mxu0 0.0
          %463 = vmatpush1.msra.mxu0 0.0
          %464 = vmatprep.subr.mxu0 0.0
          %465 = vmatpush1.msra.mxu0 0.0
          %466 = vmatprep.subr.mxu0 0.0
          %467 = vmatpush1.msra.mxu0 0.0
          %468 = vmatprep.subr.mxu0 0.0
          %469 = vmatpush1.msra.mxu0 0.0
          %470 = vmatprep.subr.mxu0 0.0
          %471 = vmatpush1.msra.mxu0 0.0
          %472 = vmatprep.subr.mxu0 0.0
          %473 = vmatpush1.msra.mxu0 0.0
          %474 = vmatprep.subr.mxu0 0.0
          %475 = vmatpush1.msra.mxu0 0.0
          %476 = vmatprep.subr.mxu0 0.0
          %477 = vmatpush1.msra.mxu0 0.0
          %478 = vmatprep.subr.mxu0 0.0
          %479 = vmatpush1.msra.mxu0 0.0
          %480 = vmatprep.subr.mxu0 0.0
          %481 = vmatpush1.msra.mxu0 0.0
          %482 = vmatprep.subr.mxu0 0.0
          %483 = vmatpush1.msra.mxu0 0.0
          %484 = vmatprep.subr.mxu0 0.0
          %485 = vmatpush1.msra.mxu0 0.0
          %486 = vmatprep.subr.mxu0 0.0
          %487 = vmatpush1.msra.mxu0 0.0
          %488 = vmatprep.subr.mxu0 0.0
          %489 = vmatpush1.msra.mxu0 0.0
          %490 = vmatprep.subr.mxu0 0.0
          %491 = vmatpush1.msra.mxu0 0.0
          %492 = vmatprep.subr.mxu0 0.0
          %493 = vmatpush1.msra.mxu0 0.0
          %494 = vmatprep.subr.mxu0 0.0
          %495 = vmatpush1.msra.mxu0 0.0
          %496 = vmatprep.mubr.f32.mxu0 0.0
          %497 = vmatmul.mubr.f32.gmra.mrb[0].mxu0 %v430
          %v498 = vpop.f32.mrb[0].mxu0
          %v499 = vadd.f32 0.0, %v498
          %v500 = vpop.f32.mrb[0].mxu0
          %501 = vdwg.mxu0
          %v502 = vsel %vm428, %v499, 0.0
          %v503 = vrot.slane %v502, 4
          %v504 = vadd.f32 %v502, %v503
          %v505 = vrot.slane %v504, 2
          %v506 = vadd.f32 %v504, %v505
          %v507 = vrot.slane %v506, 1
          %v508 = vadd.f32 %v506, %v507
          %v509 = vmul.f32 %v499, %v499
          %v510 = vsel %vm428, %v509, 0.0
          %v511 = vrot.slane %v510, 4
          %v512 = vadd.f32 %v510, %v511
          %v513 = vrot.slane %v512, 2
          %v514 = vadd.f32 %v512, %v513
          %v515 = vrot.slane %v514, 1
          %v516 = vadd.f32 %v514, %v515
          %vm517 = vcmask 1040384
          %v518 = vsel %vm517, %v508, %v516
          %v519 = vld [vmem:[#allocation2] sm:$0x3]
          %v520 = vadd.f32 %v519, %v518
          %vm521 = vcmask 254976
          %522 = vst.msk [vmem:[#allocation2] sm:$0x3] %vm521, %v520
        $region76: #{tpu_custom_call.1} parent=55 // pred_fallthru
          _
        // Predicated region
        $region77: #{tpu_custom_call.1} parent=55 // pred_check
          %p523 = pneg %p367
        $region78: #{tpu_custom_call.1} parent=55 // pred_check_branch
          %525 = sbr.rel (%p523) target = $region80
        $region79: #{tpu_custom_call.1} parent=55 // pred_region
          %v526 = vld [vmem:[#allocation2 + $0x4] sm:$0x1]
          %v527 = vld [vmem:[#allocation2 + $0x5] sm:$0x1]
          %vm528 = vcmask 261120
          %v530 = vsel %vm528, %v349, 0
          %532 = vmatprep.subr.mxu0 0.0
          %533 = vmatpush1.msra.mxu0 %v350
          %534 = vmatprep.subr.mxu0 0.0
          %535 = vmatpush1.msra.mxu0 %v351
          %536 = vmatprep.subr.mxu0 0.0
          %537 = vmatpush1.msra.mxu0 %v352
          %538 = vmatprep.subr.mxu0 0.0
          %539 = vmatpush1.msra.mxu0 %v353
          %540 = vmatprep.subr.mxu0 0.0
          %541 = vmatpush1.msra.mxu0 0.0
          %542 = vmatprep.subr.mxu0 0.0
          %543 = vmatpush1.msra.mxu0 0.0
          %544 = vmatprep.subr.mxu0 0.0
          %545 = vmatpush1.msra.mxu0 0.0
          %546 = vmatprep.subr.mxu0 0.0
          %547 = vmatpush1.msra.mxu0 0.0
          %548 = vmatprep.subr.mxu0 0.0
          %549 = vmatpush1.msra.mxu0 0.0
          %550 = vmatprep.subr.mxu0 0.0
          %551 = vmatpush1.msra.mxu0 0.0
          %552 = vmatprep.subr.mxu0 0.0
          %553 = vmatpush1.msra.mxu0 0.0
          %554 = vmatprep.subr.mxu0 0.0
          %555 = vmatpush1.msra.mxu0 0.0
          %556 = vmatprep.subr.mxu0 0.0
          %557 = vmatpush1.msra.mxu0 0.0
          %558 = vmatprep.subr.mxu0 0.0
          %559 = vmatpush1.msra.mxu0 0.0
          %560 = vmatprep.subr.mxu0 0.0
          %561 = vmatpush1.msra.mxu0 0.0
          %562 = vmatprep.subr.mxu0 0.0
          %563 = vmatpush1.msra.mxu0 0.0
          %564 = vmatprep.subr.mxu0 0.0
          %565 = vmatpush1.msra.mxu0 0.0
          %566 = vmatprep.subr.mxu0 0.0
          %567 = vmatpush1.msra.mxu0 0.0
          %568 = vmatprep.subr.mxu0 0.0
          %569 = vmatpush1.msra.mxu0 0.0
          %570 = vmatprep.subr.mxu0 0.0
          %571 = vmatpush1.msra.mxu0 0.0
          %572 = vmatprep.subr.mxu0 0.0
          %573 = vmatpush1.msra.mxu0 0.0
          %574 = vmatprep.subr.mxu0 0.0
          %575 = vmatpush1.msra.mxu0 0.0
          %576 = vmatprep.subr.mxu0 0.0
          %577 = vmatpush1.msra.mxu0 0.0
          %578 = vmatprep.subr.mxu0 0.0
          %579 = vmatpush1.msra.mxu0 0.0
          %580 = vmatprep.subr.mxu0 0.0
          %581 = vmatpush1.msra.mxu0 0.0
          %582 = vmatprep.subr.mxu0 0.0
          %583 = vmatpush1.msra.mxu0 0.0
          %584 = vmatprep.subr.mxu0 0.0
          %585 = vmatpush1.msra.mxu0 0.0
          %586 = vmatprep.subr.mxu0 0.0
          %587 = vmatpush1.msra.mxu0 0.0
          %588 = vmatprep.subr.mxu0 0.0
          %589 = vmatpush1.msra.mxu0 0.0
          %590 = vmatprep.subr.mxu0 0.0
          %591 = vmatpush1.msra.mxu0 0.0
          %592 = vmatprep.subr.mxu0 0.0
          %593 = vmatpush1.msra.mxu0 0.0
          %594 = vmatprep.subr.mxu0 0.0
          %595 = vmatpush1.msra.mxu0 0.0
          %596 = vmatprep.mubr.f32.mxu0 0.0
          %597 = vmatmul.mubr.f32.gmra.mrb[0].mxu0 %v530
          %v598 = vpop.f32.mrb[0].mxu0
          %v599 = vadd.f32 0.0, %v598
          %v600 = vpop.f32.mrb[0].mxu0
          %601 = vdwg.mxu0
          %v602 = vlaneseq
          %v603 = vshrl.u32 %v602, 7
          %v604 = vsub.s32 0, %v603
          %v605 = vrot.slane %v526, %v604
          %v606 = vmul.f32 %v599, %v605
          %v607 = vlaneseq
          %v608 = vshrl.u32 %v607, 7
          %v609 = vsub.s32 0, %v608
          %v610 = vrot.slane %v527, %v609
          %v611 = vadd.f32 %v606, %v610
          %v612 = vmax.f32 %v611, 0.0
          %v614 = vsel %vm528, %v612, 0
          %616 = vmatprep.subr.mxu0 0.0
          %617 = vmatpush1.msra.mxu0 %v354
          %618 = vmatprep.subr.mxu0 0.0
          %619 = vmatpush1.msra.mxu0 %v355
          %620 = vmatprep.subr.mxu0 0.0
          %621 = vmatpush1.msra.mxu0 %v356
          %622 = vmatprep.subr.mxu0 0.0
          %623 = vmatpush1.msra.mxu0 %v357
          %624 = vmatprep.subr.mxu0 0.0
          %625 = vmatpush1.msra.mxu0 0.0
          %626 = vmatprep.subr.mxu0 0.0
          %627 = vmatpush1.msra.mxu0 0.0
          %628 = vmatprep.subr.mxu0 0.0
          %629 = vmatpush1.msra.mxu0 0.0
          %630 = vmatprep.subr.mxu0 0.0
          %631 = vmatpush1.msra.mxu0 0.0
          %632 = vmatprep.subr.mxu0 0.0
          %633 = vmatpush1.msra.mxu0 0.0
          %634 = vmatprep.subr.mxu0 0.0
          %635 = vmatpush1.msra.mxu0 0.0
          %636 = vmatprep.subr.mxu0 0.0
          %637 = vmatpush1.msra.mxu0 0.0
          %638 = vmatprep.subr.mxu0 0.0
          %639 = vmatpush1.msra.mxu0 0.0
          %640 = vmatprep.subr.mxu0 0.0
          %641 = vmatpush1.msra.mxu0 0.0
          %642 = vmatprep.subr.mxu0 0.0
          %643 = vmatpush1.msra.mxu0 0.0
          %644 = vmatprep.subr.mxu0 0.0
          %645 = vmatpush1.msra.mxu0 0.0
          %646 = vmatprep.subr.mxu0 0.0
          %647 = vmatpush1.msra.mxu0 0.0
          %648 = vmatprep.subr.mxu0 0.0
          %649 = vmatpush1.msra.mxu0 0.0
          %650 = vmatprep.subr.mxu0 0.0
          %651 = vmatpush1.msra.mxu0 0.0
          %652 = vmatprep.subr.mxu0 0.0
          %653 = vmatpush1.msra.mxu0 0.0
          %654 = vmatprep.subr.mxu0 0.0
          %655 = vmatpush1.msra.mxu0 0.0
          %656 = vmatprep.subr.mxu0 0.0
          %657 = vmatpush1.msra.mxu0 0.0
          %658 = vmatprep.subr.mxu0 0.0
          %659 = vmatpush1.msra.mxu0 0.0
          %660 = vmatprep.subr.mxu0 0.0
          %661 = vmatpush1.msra.mxu0 0.0
          %662 = vmatprep.subr.mxu0 0.0
          %663 = vmatpush1.msra.mxu0 0.0
          %664 = vmatprep.subr.mxu0 0.0
          %665 = vmatpush1.msra.mxu0 0.0
          %666 = vmatprep.subr.mxu0 0.0
          %667 = vmatpush1.msra.mxu0 0.0
          %668 = vmatprep.subr.mxu0 0.0
          %669 = vmatpush1.msra.mxu0 0.0
          %670 = vmatprep.subr.mxu0 0.0
          %671 = vmatpush1.msra.mxu0 0.0
          %672 = vmatprep.subr.mxu0 0.0
          %673 = vmatpush1.msra.mxu0 0.0
          %674 = vmatprep.subr.mxu0 0.0
          %675 = vmatpush1.msra.mxu0 0.0
          %676 = vmatprep.subr.mxu0 0.0
          %677 = vmatpush1.msra.mxu0 0.0
          %678 = vmatprep.subr.mxu0 0.0
          %679 = vmatpush1.msra.mxu0 0.0
          %680 = vmatprep.mubr.f32.mxu0 0.0
          %681 = vmatmul.mubr.f32.gmra.mrb[0].mxu0 %v614
          %v682 = vpop.f32.mrb[0].mxu0
          %v683 = vadd.f32 0.0, %v682
          %v684 = vpop.f32.mrb[0].mxu0
          %685 = vdwg.mxu0
          %vm686 = vcmask 130048
          %v687 = vsel %vm686, %v683, 0.0
          %v688 = vrot.slane %v687, 4
          %v689 = vadd.f32 %v687, %v688
          %v690 = vrot.slane %v689, 2
          %v691 = vadd.f32 %v689, %v690
          %v692 = vrot.slane %v691, 1
          %v693 = vadd.f32 %v691, %v692
          %v694 = vmul.f32 %v683, %v683
          %v695 = vsel %vm686, %v694, 0.0
          %v696 = vrot.slane %v695, 4
          %v697 = vadd.f32 %v695, %v696
          %v698 = vrot.slane %v697, 2
          %v699 = vadd.f32 %v697, %v698
          %v700 = vrot.slane %v699, 1
          %v701 = vadd.f32 %v699, %v700
          %vm702 = vcmask 1040384
          %v703 = vsel %vm702, %v693, %v701
          %v704 = vld [vmem:[#allocation2 + $0x2] sm:$0x3]
          %v705 = vadd.f32 %v704, %v703
          %vm706 = vcmask 123904
          %707 = vst.msk [vmem:[#allocation2 + $0x2] sm:$0x3] %vm706, %v705
        $region80: #{tpu_custom_call.1} parent=55 // pred_fallthru
          _
        // Predicated region
        $region81: #{tpu_custom_call.1} parent=55 // pred_check
          %p708 = pneg %p396
        $region82: #{tpu_custom_call.1} parent=55 // pred_check_branch
          %710 = sbr.rel (%p708) target = $region84
        $region83: #{tpu_custom_call.1} parent=55 // pred_region
          %v711 = vld [vmem:[#allocation2 + $0x4] sm:$0x1]
          %v712 = vld [vmem:[#allocation2 + $0x5] sm:$0x1]
          %v713 = vld [vmem:[#allocation2 + $0x6] sm:$0x1]
          %v714 = vld [vmem:[#allocation2 + $0x7] sm:$0x1]
          %vm715 = vcmask 261120
          %v717 = vsel %vm715, %v349, 0
          %719 = vmatprep.subr.mxu0 0.0
          %720 = vmatpush1.msra.mxu0 %v350
          %721 = vmatprep.subr.mxu0 0.0
          %722 = vmatpush1.msra.mxu0 %v351
          %723 = vmatprep.subr.mxu0 0.0
          %724 = vmatpush1.msra.mxu0 %v352
          %725 = vmatprep.subr.mxu0 0.0
          %726 = vmatpush1.msra.mxu0 %v353
          %727 = vmatprep.subr.mxu0 0.0
          %728 = vmatpush1.msra.mxu0 0.0
          %729 = vmatprep.subr.mxu0 0.0
          %730 = vmatpush1.msra.mxu0 0.0
          %731 = vmatprep.subr.mxu0 0.0
          %732 = vmatpush1.msra.mxu0 0.0
          %733 = vmatprep.subr.mxu0 0.0
          %734 = vmatpush1.msra.mxu0 0.0
          %735 = vmatprep.subr.mxu0 0.0
          %736 = vmatpush1.msra.mxu0 0.0
          %737 = vmatprep.subr.mxu0 0.0
          %738 = vmatpush1.msra.mxu0 0.0
          %739 = vmatprep.subr.mxu0 0.0
          %740 = vmatpush1.msra.mxu0 0.0
          %741 = vmatprep.subr.mxu0 0.0
          %742 = vmatpush1.msra.mxu0 0.0
          %743 = vmatprep.subr.mxu0 0.0
          %744 = vmatpush1.msra.mxu0 0.0
          %745 = vmatprep.subr.mxu0 0.0
          %746 = vmatpush1.msra.mxu0 0.0
          %747 = vmatprep.subr.mxu0 0.0
          %748 = vmatpush1.msra.mxu0 0.0
          %749 = vmatprep.subr.mxu0 0.0
          %750 = vmatpush1.msra.mxu0 0.0
          %751 = vmatprep.subr.mxu0 0.0
          %752 = vmatpush1.msra.mxu0 0.0
          %753 = vmatprep.subr.mxu0 0.0
          %754 = vmatpush1.msra.mxu0 0.0
          %755 = vmatprep.subr.mxu0 0.0
          %756 = vmatpush1.msra.mxu0 0.0
          %757 = vmatprep.subr.mxu0 0.0
          %758 = vmatpush1.msra.mxu0 0.0
          %759 = vmatprep.subr.mxu0 0.0
          %760 = vmatpush1.msra.mxu0 0.0
          %761 = vmatprep.subr.mxu0 0.0
          %762 = vmatpush1.msra.mxu0 0.0
          %763 = vmatprep.subr.mxu0 0.0
          %764 = vmatpush1.msra.mxu0 0.0
          %765 = vmatprep.subr.mxu0 0.0
          %766 = vmatpush1.msra.mxu0 0.0
          %767 = vmatprep.subr.mxu0 0.0
          %768 = vmatpush1.msra.mxu0 0.0
          %769 = vmatprep.subr.mxu0 0.0
          %770 = vmatpush1.msra.mxu0 0.0
          %771 = vmatprep.subr.mxu0 0.0
          %772 = vmatpush1.msra.mxu0 0.0
          %773 = vmatprep.subr.mxu0 0.0
          %774 = vmatpush1.msra.mxu0 0.0
          %775 = vmatprep.subr.mxu0 0.0
          %776 = vmatpush1.msra.mxu0 0.0
          %777 = vmatprep.subr.mxu0 0.0
          %778 = vmatpush1.msra.mxu0 0.0
          %779 = vmatprep.subr.mxu0 0.0
          %780 = vmatpush1.msra.mxu0 0.0
          %781 = vmatprep.subr.mxu0 0.0
          %782 = vmatpush1.msra.mxu0 0.0
          %783 = vmatprep.mubr.f32.mxu0 0.0
          %784 = vmatmul.mubr.f32.gmra.mrb[0].mxu0 %v717
          %v785 = vpop.f32.mrb[0].mxu0
          %v786 = vadd.f32 0.0, %v785
          %v787 = vpop.f32.mrb[0].mxu0
          %788 = vdwg.mxu0
          %v789 = vlaneseq
          %v790 = vshrl.u32 %v789, 7
          %v791 = vsub.s32 0, %v790
          %v792 = vrot.slane %v711, %v791
          %v793 = vmul.f32 %v786, %v792
          %v794 = vlaneseq
          %v795 = vshrl.u32 %v794, 7
          %v796 = vsub.s32 0, %v795
          %v797 = vrot.slane %v712, %v796
          %v798 = vadd.f32 %v793, %v797
          %v799 = vmax.f32 %v798, 0.0
          %v801 = vsel %vm715, %v799, 0
          %803 = vmatprep.subr.mxu0 0.0
          %804 = vmatpush1.msra.mxu0 %v354
          %805 = vmatprep.subr.mxu0 0.0
          %806 = vmatpush1.msra.mxu0 %v355
          %807 = vmatprep.subr.mxu0 0.0
          %808 = vmatpush1.msra.mxu0 %v356
          %809 = vmatprep.subr.mxu0 0.0
          %810 = vmatpush1.msra.mxu0 %v357
          %811 = vmatprep.subr.mxu0 0.0
          %812 = vmatpush1.msra.mxu0 0.0
          %813 = vmatprep.subr.mxu0 0.0
          %814 = vmatpush1.msra.mxu0 0.0
          %815 = vmatprep.subr.mxu0 0.0
          %816 = vmatpush1.msra.mxu0 0.0
          %817 = vmatprep.subr.mxu0 0.0
          %818 = vmatpush1.msra.mxu0 0.0
          %819 = vmatprep.subr.mxu0 0.0
          %820 = vmatpush1.msra.mxu0 0.0
          %821 = vmatprep.subr.mxu0 0.0
          %822 = vmatpush1.msra.mxu0 0.0
          %823 = vmatprep.subr.mxu0 0.0
          %824 = vmatpush1.msra.mxu0 0.0
          %825 = vmatprep.subr.mxu0 0.0
          %826 = vmatpush1.msra.mxu0 0.0
          %827 = vmatprep.subr.mxu0 0.0
          %828 = vmatpush1.msra.mxu0 0.0
          %829 = vmatprep.subr.mxu0 0.0
          %830 = vmatpush1.msra.mxu0 0.0
          %831 = vmatprep.subr.mxu0 0.0
          %832 = vmatpush1.msra.mxu0 0.0
          %833 = vmatprep.subr.mxu0 0.0
          %834 = vmatpush1.msra.mxu0 0.0
          %835 = vmatprep.subr.mxu0 0.0
          %836 = vmatpush1.msra.mxu0 0.0
          %837 = vmatprep.subr.mxu0 0.0
          %838 = vmatpush1.msra.mxu0 0.0
          %839 = vmatprep.subr.mxu0 0.0
          %840 = vmatpush1.msra.mxu0 0.0
          %841 = vmatprep.subr.mxu0 0.0
          %842 = vmatpush1.msra.mxu0 0.0
          %843 = vmatprep.subr.mxu0 0.0
          %844 = vmatpush1.msra.mxu0 0.0
          %845 = vmatprep.subr.mxu0 0.0
          %846 = vmatpush1.msra.mxu0 0.0
          %847 = vmatprep.subr.mxu0 0.0
          %848 = vmatpush1.msra.mxu0 0.0
          %849 = vmatprep.subr.mxu0 0.0
          %850 = vmatpush1.msra.mxu0 0.0
          %851 = vmatprep.subr.mxu0 0.0
          %852 = vmatpush1.msra.mxu0 0.0
          %853 = vmatprep.subr.mxu0 0.0
          %854 = vmatpush1.msra.mxu0 0.0
          %855 = vmatprep.subr.mxu0 0.0
          %856 = vmatpush1.msra.mxu0 0.0
          %857 = vmatprep.subr.mxu0 0.0
          %858 = vmatpush1.msra.mxu0 0.0
          %859 = vmatprep.subr.mxu0 0.0
          %860 = vmatpush1.msra.mxu0 0.0
          %861 = vmatprep.subr.mxu0 0.0
          %862 = vmatpush1.msra.mxu0 0.0
          %863 = vmatprep.subr.mxu0 0.0
          %864 = vmatpush1.msra.mxu0 0.0
          %865 = vmatprep.subr.mxu0 0.0
          %866 = vmatpush1.msra.mxu0 0.0
          %867 = vmatprep.mubr.f32.mxu0 0.0
          %868 = vmatmul.mubr.f32.gmra.mrb[0].mxu0 %v801
          %v869 = vpop.f32.mrb[0].mxu0
          %v870 = vadd.f32 0.0, %v869
          %v871 = vpop.f32.mrb[0].mxu0
          %872 = vdwg.mxu0
          %v873 = vlaneseq
          %v874 = vshrl.u32 %v873, 7
          %v875 = vsub.s32 0, %v874
          %v876 = vrot.slane %v713, %v875
          %v877 = vmul.f32 %v870, %v876
          %v878 = vlaneseq
          %v879 = vshrl.u32 %v878, 7
          %v880 = vsub.s32 0, %v879
          %v881 = vrot.slane %v714, %v880
          %v882 = vadd.f32 %v877, %v881
          %v883 = vmax.f32 %v882, 0.0
          %v884 = vld [vmem:[%s3] sm:$0xff]
          %v885 = vld [vmem:[%s3 + $0x8] sm:$0xff]
          %v886 = vld [vmem:[%s8] sm:$0x1]
          %v888 = vlaneseq
          %v889 = vshrl.u32 %v888, 7
          %v890 = vsub.s32 0, %v889
          %v891 = vrot.slane %v886, %v890
          %vm893 = vcmask 130048
          %v895 = vsel %vm893, %v883, 0
          %897 = vmatprep.subr.mxu0 0.0
          %898 = vmatpush1.msra.mxu0 %v884
          %899 = vmatprep.subr.mxu0 0.0
          %900 = vmatpush1.msra.mxu0 %v885
          %901 = vmatprep.subr.mxu0 0.0
          %902 = vmatpush1.msra.mxu0 0.0
          %903 = vmatprep.subr.mxu0 0.0
          %904 = vmatpush1.msra.mxu0 0.0
          %905 = vmatprep.subr.mxu0 0.0
          %906 = vmatpush1.msra.mxu0 0.0
          %907 = vmatprep.subr.mxu0 0.0
          %908 = vmatpush1.msra.mxu0 0.0
          %909 = vmatprep.subr.mxu0 0.0
          %910 = vmatpush1.msra.mxu0 0.0
          %911 = vmatprep.subr.mxu0 0.0
          %912 = vmatpush1.msra.mxu0 0.0
          %913 = vmatprep.subr.mxu0 0.0
          %914 = vmatpush1.msra.mxu0 0.0
          %915 = vmatprep.subr.mxu0 0.0
          %916 = vmatpush1.msra.mxu0 0.0
          %917 = vmatprep.subr.mxu0 0.0
          %918 = vmatpush1.msra.mxu0 0.0
          %919 = vmatprep.subr.mxu0 0.0
          %920 = vmatpush1.msra.mxu0 0.0
          %921 = vmatprep.subr.mxu0 0.0
          %922 = vmatpush1.msra.mxu0 0.0
          %923 = vmatprep.subr.mxu0 0.0
          %924 = vmatpush1.msra.mxu0 0.0
          %925 = vmatprep.subr.mxu0 0.0
          %926 = vmatpush1.msra.mxu0 0.0
          %927 = vmatprep.subr.mxu0 0.0
          %928 = vmatpush1.msra.mxu0 0.0
          %929 = vmatprep.subr.mxu0 0.0
          %930 = vmatpush1.msra.mxu0 0.0
          %931 = vmatprep.subr.mxu0 0.0
          %932 = vmatpush1.msra.mxu0 0.0
          %933 = vmatprep.subr.mxu0 0.0
          %934 = vmatpush1.msra.mxu0 0.0
          %935 = vmatprep.subr.mxu0 0.0
          %936 = vmatpush1.msra.mxu0 0.0
          %937 = vmatprep.subr.mxu0 0.0
          %938 = vmatpush1.msra.mxu0 0.0
          %939 = vmatprep.subr.mxu0 0.0
          %940 = vmatpush1.msra.mxu0 0.0
          %941 = vmatprep.subr.mxu0 0.0
          %942 = vmatpush1.msra.mxu0 0.0
          %943 = vmatprep.subr.mxu0 0.0
          %944 = vmatpush1.msra.mxu0 0.0
          %945 = vmatprep.subr.mxu0 0.0
          %946 = vmatpush1.msra.mxu0 0.0
          %947 = vmatprep.subr.mxu0 0.0
          %948 = vmatpush1.msra.mxu0 0.0
          %949 = vmatprep.subr.mxu0 0.0
          %950 = vmatpush1.msra.mxu0 0.0
          %951 = vmatprep.subr.mxu0 0.0
          %952 = vmatpush1.msra.mxu0 0.0
          %953 = vmatprep.subr.mxu0 0.0
          %954 = vmatpush1.msra.mxu0 0.0
          %955 = vmatprep.subr.mxu0 0.0
          %956 = vmatpush1.msra.mxu0 0.0
          %957 = vmatprep.subr.mxu0 0.0
          %958 = vmatpush1.msra.mxu0 0.0
          %959 = vmatprep.subr.mxu0 0.0
          %960 = vmatpush1.msra.mxu0 0.0
          %961 = vmatprep.mubr.f32.mxu0 0.0
          %962 = vmatmul.mubr.f32.gmra.mrb[0].mxu0 %v895
          %v963 = vpop.f32.mrb[0].mxu0
          %v964 = vadd.f32 %v891, %v963
          %v965 = vpop.f32.mrb[0].mxu0
          %966 = vdwg.mxu0
          %v967 = vmul.f32 %v964, 0.5
          %v968 = vtanh.pop %v967
          %v969 = vmul.f32 %v968, 0.5
          %v970 = vadd.f32 %v969, 0.5
          %971 = vst.msk [vmem:[%s346] sm:$0xff] %vm715, %v970
        $region84: #{tpu_custom_call.1} parent=55 // pred_fallthru
          _
        %s972 = sand.u32 %s242, 1
        %s973 = scalar_lea.sflag [#allocation5], %s972
        %s974 = sand.u32 %s242, 1
        %s975 = smul.addr %s974, 8
        %s976 = scalar_lea.vmem [#allocation6], %s975
        // Predicated region
        $region85: #{tpu_custom_call.1} parent=55 // pred_check
          %p977 = pneg %p252
        $region86: #{tpu_custom_call.1} parent=55 // pred_check_branch
          %979 = sbr.rel (%p977) target = $region88
        $region87: #{tpu_custom_call.1} parent=55 // pred_region
          %p980 = scmp.eq.s32.totalorder %s28, 2
          %s981 = scalar_select %p980, %s29, 0
          %s983 = ssub.s32 128, 128
          %984 = vsyncadd %s973, %s983
          %s985 = smul.addr %s981, 128
          %s986 = scalar_lea.hbm %s9, %s985
          %s988 = sshll.u32 %s976, 4
          %s989 = int_to_ptr.vmem [resolvable:$true] %s988
          %991 = dma.vmem_to_hbm [thread:$0]  %s989, 128, %s986, %s973
        $region88: #{tpu_custom_call.1} parent=55 // pred_fallthru
          _
      $region56: #{tpu_custom_call.1} parent=5 // pred_fallthru
        _
      %p992 = scmp.le.s32.totalorder 2, %s19
      // Predicated region
      $region89: #{tpu_custom_call.1} parent=5 // pred_check
        %p993 = pneg %p992
      $region90: #{tpu_custom_call.1} parent=5 // pred_check_branch
        %995 = sbr.rel (%p993) target = $region92
      $region91: #{tpu_custom_call.1} parent=5 // pred_region
        %s996 = ssub.s32 %s19, 2
        // Predicated region
        $region93: #{tpu_custom_call.1} parent=91 // pred_check
          %p997 = pneg %p258
        $region94: #{tpu_custom_call.1} parent=91 // pred_check_branch
          %999 = sbr.rel (%p997) target = $region96
        $region95: #{tpu_custom_call.1} parent=91 // pred_region
          %s1000 = sand.u32 %s243, 1
          %s1001 = scalar_lea.sflag [#allocation5], %s1000
          %s1002 = sand.u32 %s243, 1
          %s1003 = smul.addr %s1002, 8
          %s1004 = scalar_lea.vmem [#allocation6], %s1003
          %1005 = dma.done %s1001, 128
        $region96: #{tpu_custom_call.1} parent=91 // pred_fallthru
          _
      $region92: #{tpu_custom_call.1} parent=5 // pred_fallthru
        _
    $region6: #{tpu_custom_call.1} parent=1 // loop_footer
      %s23 = sadd.s32 1, %s19
    $region7: #{tpu_custom_call.1} parent=1 // loop_footer_branch
      %18 = sbr.rel target = $region3
    $region8: #{tpu_custom_call.1} parent=1 // loop_exit
      _
    %1006 = vsyncpa [#allocation4], 1
    %s1007 = scalar_lea.sflag [#allocation4], 1
    %1008 = vsyncpa %s1007, 1
    %1009 = vsyncpa [#allocation5], 1
    %s1010 = scalar_lea.sflag [#allocation5], 1
    %1011 = vsyncpa %s1010, 1

</llo_original>
